<compile_context>
chip_gen: v6e
topology: v6e:2x2x1
jax: 0.10.0
libtpu: 0.0.40
codegen_flags: <defaults>
</compile_context>

<pallas_src>
import functools

import jax
import jax.numpy as jnp
from jax import lax
from jax.experimental import pallas as pl
from jax.experimental.pallas import tpu as pltpu

NEG_SLOPE = 0.01   # nn.LeakyReLU() default negative_slope
LANE = 128
SUBLANE = 8


def _round_up(x, m):
    return (x + m - 1) // m * m


def _pad_to(a, shape):
    pads = [(0, s - d) for d, s in zip(a.shape, shape)]
    return jnp.pad(a, pads)


# -----------------------------------------------------------------------------
# Fused kernel: frame-level MLP + (masked) frame-sum accumulate + finalize head
# -----------------------------------------------------------------------------
def _fused_mlp_kernel(x_ref, wf_ref, bf_ref, wu_ref, bu_ref,      # inputs
                      logits_ref, emb_ref,                        # outputs
                      acc_ref,                                    # scratch
                      *, num_layers, frames, frame_tile):
    t = pl.program_id(1)

    @pl.when(t == 0)
    def _init():
        acc_ref[...] = jnp.zeros_like(acc_ref)

    x = x_ref[0].astype(jnp.float32)                      # (TT, P)

    # Frame-level MLP: statically unrolled; weights stay resident in VMEM.
    for i in range(num_layers):
        y = jnp.dot(x, wf_ref[i], preferred_element_type=jnp.float32)
        y = y + bf_ref[i]                                 # (1, P) row broadcast
        x = jnp.maximum(y, NEG_SLOPE * y)                 # LeakyReLU, 1 VPU op
        # TODO(synk): nn.Dropout is identity in eval mode; MC-dropout sampling
        # (pltpu.prng_random_bits mask) intentionally not applied here.

    # Mask zero-padded frames (branch only emitted when padding exists).
    if frames % frame_tile != 0:
        fids = t * frame_tile + lax.broadcasted_iota(
            jnp.int32, (frame_tile, 1), 0)
        x = jnp.where(fids < frames, x, 0.0)

    # Per-batch frame-sum accumulator (reduction over the 'arbitrary' axis).
    acc_ref[...] += jnp.sum(x, axis=0, keepdims=True)     # (1, P)

    @pl.when(t == pl.num_programs(1) - 1)
    def _finalize():
        feat_utt = acc_ref[...] * (1.0 / frames)          # frame mean, (1, P)
        emb_ref[0] = feat_utt.astype(emb_ref.dtype)
        logits = jnp.dot(feat_utt, wu_ref[...],
                         preferred_element_type=jnp.float32) + bu_ref[...]
        logits_ref[0] = logits.astype(logits_ref.dtype)


# -----------------------------------------------------------------------------
# Wrapper: pad to lane-dense shapes, build the fused pallas_call
# -----------------------------------------------------------------------------
def mlp_forward(params, feat, *, frame_tile_max=512):
    B, T, D = feat.shape
    frame = params["frame"]
    L = len(frame)
    out_dim = frame[-1][0].shape[1]
    C = params["utt_w"].shape[1]

    # Lane-dense padded feature / class dims (zero padding is exact).
    P = _round_up(max(D, out_dim), LANE)
    Cp = _round_up(C, LANE)

    # Frame tile (rows per grid step), padded frame count.
    TT = min(_round_up(T, SUBLANE), frame_tile_max)
    T_pad = _round_up(T, TT)

    feat_p = _pad_to(feat, (B, T_pad, P))
    wf = jnp.stack([_pad_to(w, (P, P)) for (w, _) in frame])            # (L,P,P)
    bf = jnp.stack([_pad_to(b.reshape(1, -1), (1, P)) for (_, b) in frame])
    wu = _pad_to(params["utt_w"], (P, Cp))
    bu = _pad_to(params["utt_b"].reshape(1, -1), (1, Cp))

    grid = (B, T_pad // TT)

    kernel = functools.partial(_fused_mlp_kernel, num_layers=L,
                               frames=T, frame_tile=TT)

    # VMEM budget: double-buffered input tile + resident weights + outputs.
    f32b = 4
    est = (2 * TT * P                               # input tile (x2 buffers)
           + 2 * (L * P * P + L * P + P * Cp + Cp)  # weights / biases
           + 2 * (Cp + P)                           # outputs
           + P) * f32b                              # accumulator scratch
    vmem_limit = int(min(max(2 * est + (2 << 20), 16 << 20), 48 << 20))

    cost = pl.CostEstimate(
        flops=2 * B * T_pad * L * P * P + 2 * B * P * Cp,
        transcendentals=0,
        bytes_accessed=(B * T_pad * P + L * P * (P + 1) + (P + 1) * Cp
                        + B * (Cp + P)) * f32b)

    logits_p, emb_p = pl.pallas_call(
        kernel,
        out_shape=(jax.ShapeDtypeStruct((B, 1, Cp), feat.dtype),   # logits
                   jax.ShapeDtypeStruct((B, 1, P), feat.dtype)),   # emb_vec
        grid_spec=pltpu.PrefetchScalarGridSpec(
            num_scalar_prefetch=0,
            grid=grid,
            in_specs=[
                pl.BlockSpec((1, TT, P), lambda b, t: (b, t, 0)),   # feat tile
                pl.BlockSpec((L, P, P), lambda b, t: (0, 0, 0)),    # resident W
                pl.BlockSpec((L, 1, P), lambda b, t: (0, 0, 0)),    # resident b
                pl.BlockSpec((P, Cp), lambda b, t: (0, 0)),         # resident Wu
                pl.BlockSpec((1, Cp), lambda b, t: (0, 0)),         # resident bu
            ],
            out_specs=(
                pl.BlockSpec((1, 1, Cp), lambda b, t: (b, 0, 0)),
                pl.BlockSpec((1, 1, P), lambda b, t: (b, 0, 0)),
            ),
            scratch_shapes=[pltpu.VMEM((1, P), jnp.float32)],
        ),
        compiler_params=pltpu.CompilerParams(
            dimension_semantics=("parallel", "arbitrary"),
            vmem_limit_bytes=vmem_limit),
        cost_estimate=cost,
    )(feat_p, wf, bf, wu, bu)

    logits = logits_p[:, 0, :C]
    emb_vec = emb_p[:, 0, :out_dim]
    return logits, emb_vec


# -----------------------------------------------------------------------------
# Parameter init (deterministic, PyTorch-like uniform(+-1/sqrt(fan_in)))
# -----------------------------------------------------------------------------
def init_mlp_params(key, input_dim, out_dim, num_layers, num_classes,
                    dtype=jnp.float32):
    params = {"frame": []}
    for i in range(num_layers):
        in_d = input_dim
        out_d = input_dim if i < num_layers - 1 else out_dim
        key, kw, kb = jax.random.split(key, 3)
        bound = 1.0 / jnp.sqrt(in_d)
        # stored as (in, out) so the kernel does x @ W directly
        w = jax.random.uniform(kw, (in_d, out_d), dtype, -bound, bound)
        b = jax.random.uniform(kb, (out_d,), dtype, -bound, bound)
        params["frame"].append((w, b))
    key, kw, kb = jax.random.split(key, 3)
    bound = 1.0 / jnp.sqrt(out_dim)
    params["utt_w"] = jax.random.uniform(kw, (out_dim, num_classes), dtype,
                                         -bound, bound)
    params["utt_b"] = jax.random.uniform(kb, (num_classes,), dtype,
                                         -bound, bound)
    return params


# Pure-JAX reference for correctness checking.
def mlp_forward_ref(params, feat):
    B, T, D = feat.shape
    x = feat.reshape(B * T, D)
    for (w, b) in params["frame"]:
        y = x @ w + b
        x = jnp.where(y >= 0.0, y, NEG_SLOPE * y)
    feat_ = x.reshape(B, T, -1)
    feat_utt = feat_.mean(axis=1)
    logits = feat_utt @ params["utt_w"] + params["utt_b"]
    return logits, feat_utt


if __name__ == "__main__":
    # small shapes consistent with (batch, frame_num, feat_dim) input
    batch, frames = 2, 8
    input_dim, out_dim, num_layers, num_classes, dropout_rate = 32, 16, 3, 4, 0.5

    key = jax.random.PRNGKey(0)
    key, kx = jax.random.split(key)
    feat = jax.random.normal(kx, (batch, frames, input_dim), jnp.float32)

    params = init_mlp_params(key, input_dim, out_dim, num_layers, num_classes)

    logits, emb_vec = jax.jit(mlp_forward)(params, feat)
    logits = jax.block_until_ready(logits)
    emb_vec = jax.block_until_ready(emb_vec)

    ref_logits, ref_emb = mlp_forward_ref(params, feat)
    assert logits.shape == (batch, num_classes)
    assert emb_vec.shape == (batch, out_dim)
    assert jnp.allclose(logits, ref_logits, atol=2e-5, rtol=2e-5)
    assert jnp.allclose(emb_vec, ref_emb, atol=2e-5, rtol=2e-5)

    print("KERNEL_OK")
</pallas_src>

<mosaic_0001>
module attributes {stable_mosaic.version = 11 : i64} {
  func.func @_fused_mlp_kernel(%arg0: i32, %arg1: i32, %arg2: memref<1x8x128xf32, #tpu.memory_space<vmem>>, %arg3: memref<3x128x128xf32, #tpu.memory_space<vmem>>, %arg4: memref<3x1x128xf32, #tpu.memory_space<vmem>>, %arg5: memref<128x128xf32, #tpu.memory_space<vmem>>, %arg6: memref<1x128xf32, #tpu.memory_space<vmem>>, %arg7: memref<1x1x128xf32, #tpu.memory_space<vmem>>, %arg8: memref<1x1x128xf32, #tpu.memory_space<vmem>>, %arg9: memref<1x128xf32, #tpu.memory_space<vmem>>) attributes {dimension_semantics = [#tpu.dimension_semantics<parallel>, #tpu.dimension_semantics<arbitrary>], iteration_bounds = array<i64: 2, 1>, scalar_prefetch = 0 : i64, scratch_operands = 1 : i64, tpu.core_type = #tpu.core_type<tc>, window_params = [{transform_indices = @transform_0, window_bounds = array<i64: 1, 8, 128>}, {pipeline_mode = #tpu.pipeline_mode<synchronous>, transform_indices = @transform_1, window_bounds = array<i64: 3, 128, 128>}, {pipeline_mode = #tpu.pipeline_mode<synchronous>, transform_indices = @transform_2, window_bounds = array<i64: 3, 1, 128>}, {pipeline_mode = #tpu.pipeline_mode<synchronous>, transform_indices = @transform_3, window_bounds = array<i64: 128, 128>}, {pipeline_mode = #tpu.pipeline_mode<synchronous>, transform_indices = @transform_4, window_bounds = array<i64: 1, 128>}, {transform_indices = @transform_5, window_bounds = array<i64: 1, 1, 128>}, {transform_indices = @transform_6, window_bounds = array<i64: 1, 1, 128>}]} {
    %c0_i32 = arith.constant 0 : i32
    %0 = arith.cmpi eq, %arg1, %c0_i32 : i32
    %1 = arith.extui %0 : i1 to i32
    %c0_i32_0 = arith.constant 0 : i32
    %2 = arith.cmpi ne, %1, %c0_i32_0 : i32
    scf.if %2 {
      %cst_31 = arith.constant 0.000000e+00 : f32
      %43 = vector.broadcast %cst_31 : f32 to vector<1x128xf32>
      %c0_32 = arith.constant 0 : index
      %c0_33 = arith.constant 0 : index
      %44 = vector.load %arg9[%c0_32, %c0_33] : memref<1x128xf32, #tpu.memory_space<vmem>>, vector<1x128xf32>
      tpu.vector_store %arg9[%c0_32, %c0_33], %43 {strides = array<i32>} : memref<1x128xf32, #tpu.memory_space<vmem>>, vector<1x128xf32>,
    } else {
    }
    %c0 = arith.constant 0 : index
    %c0_1 = arith.constant 0 : index
    %c0_2 = arith.constant 0 : index
    %3 = vector.load %arg2[%c0, %c0_1, %c0_2] : memref<1x8x128xf32, #tpu.memory_space<vmem>>, vector<1x8x128xf32>
    %4 = vector.shape_cast %3 : vector<1x8x128xf32> to vector<8x128xf32>
    %c0_3 = arith.constant 0 : index
    %c0_4 = arith.constant 0 : index
    %c0_5 = arith.constant 0 : index
    %5 = vector.load %arg3[%c0_3, %c0_4, %c0_5] : memref<3x128x128xf32, #tpu.memory_space<vmem>>, vector<1x128x128xf32>
    %6 = vector.shape_cast %5 : vector<1x128x128xf32> to vector<128x128xf32>
    %cst = arith.constant dense<0.000000e+00> : vector<8x128xf32>
    %7 = tpu.matmul %4, %6, %cst {dimension_numbers = #tpu.dot_dimension_numbers<[1], [0], [0], [1], [0, 0, 1, 1], [], []>} : vector<8x128xf32>, vector<128x128xf32>, vector<8x128xf32> -> vector<8x128xf32>
    %c0_6 = arith.constant 0 : index
    %c0_7 = arith.constant 0 : index
    %c0_8 = arith.constant 0 : index
    %8 = vector.load %arg4[%c0_6, %c0_7, %c0_8] : memref<3x1x128xf32, #tpu.memory_space<vmem>>, vector<1x1x128xf32>
    %9 = vector.shape_cast %8 : vector<1x1x128xf32> to vector<1x128xf32>
    %10 = vector.broadcast %9 : vector<1x128xf32> to vector<8x128xf32>
    %11 = arith.addf %7, %10 : vector<8x128xf32>
    %cst_9 = arith.constant 0.00999999977 : f32
    %12 = vector.broadcast %cst_9 : f32 to vector<8x128xf32>
    %13 = arith.mulf %12, %11 : vector<8x128xf32>
    %14 = arith.maximumf %11, %13 : vector<8x128xf32>
    %c1 = arith.constant 1 : index
    %c0_10 = arith.constant 0 : index
    %c0_11 = arith.constant 0 : index
    %15 = vector.load %arg3[%c1, %c0_10, %c0_11] : memref<3x128x128xf32, #tpu.memory_space<vmem>>, vector<1x128x128xf32>
    %16 = vector.shape_cast %15 : vector<1x128x128xf32> to vector<128x128xf32>
    %cst_12 = arith.constant dense<0.000000e+00> : vector<8x128xf32>
    %17 = tpu.matmul %14, %16, %cst_12 {dimension_numbers = #tpu.dot_dimension_numbers<[1], [0], [0], [1], [0, 0, 1, 1], [], []>} : vector<8x128xf32>, vector<128x128xf32>, vector<8x128xf32> -> vector<8x128xf32>
    %c1_13 = arith.constant 1 : index
    %c0_14 = arith.constant 0 : index
    %c0_15 = arith.constant 0 : index
    %18 = vector.load %arg4[%c1_13, %c0_14, %c0_15] : memref<3x1x128xf32, #tpu.memory_space<vmem>>, vector<1x1x128xf32>
    %19 = vector.shape_cast %18 : vector<1x1x128xf32> to vector<1x128xf32>
    %20 = vector.broadcast %19 : vector<1x128xf32> to vector<8x128xf32>
    %21 = arith.addf %17, %20 : vector<8x128xf32>
    %cst_16 = arith.constant 0.00999999977 : f32
    %22 = vector.broadcast %cst_16 : f32 to vector<8x128xf32>
    %23 = arith.mulf %22, %21 : vector<8x128xf32>
    %24 = arith.maximumf %21, %23 : vector<8x128xf32>
    %c2 = arith.constant 2 : index
    %c0_17 = arith.constant 0 : index
    %c0_18 = arith.constant 0 : index
    %25 = vector.load %arg3[%c2, %c0_17, %c0_18] : memref<3x128x128xf32, #tpu.memory_space<vmem>>, vector<1x128x128xf32>
    %26 = vector.shape_cast %25 : vector<1x128x128xf32> to vector<128x128xf32>
    %cst_19 = arith.constant dense<0.000000e+00> : vector<8x128xf32>
    %27 = tpu.matmul %24, %26, %cst_19 {dimension_numbers = #tpu.dot_dimension_numbers<[1], [0], [0], [1], [0, 0, 1, 1], [], []>} : vector<8x128xf32>, vector<128x128xf32>, vector<8x128xf32> -> vector<8x128xf32>
    %c2_20 = arith.constant 2 : index
    %c0_21 = arith.constant 0 : index
    %c0_22 = arith.constant 0 : index
    %28 = vector.load %arg4[%c2_20, %c0_21, %c0_22] : memref<3x1x128xf32, #tpu.memory_space<vmem>>, vector<1x1x128xf32>
    %29 = vector.shape_cast %28 : vector<1x1x128xf32> to vector<1x128xf32>
    %30 = vector.broadcast %29 : vector<1x128xf32> to vector<8x128xf32>
    %31 = arith.addf %27, %30 : vector<8x128xf32>
    %cst_23 = arith.constant 0.00999999977 : f32
    %32 = vector.broadcast %cst_23 : f32 to vector<8x128xf32>
    %33 = arith.mulf %32, %31 : vector<8x128xf32>
    %34 = arith.maximumf %31, %33 : vector<8x128xf32>
    %c0_24 = arith.constant 0 : index
    %c0_25 = arith.constant 0 : index
    %35 = vector.load %arg9[%c0_24, %c0_25] : memref<1x128xf32, #tpu.memory_space<vmem>>, vector<1x128xf32>
    %cst_26 = arith.constant dense<0.000000e+00> : vector<128xf32>
    %36 = vector.multi_reduction <add>, %34, %cst_26 [0] : vector<8x128xf32> to vector<128xf32>
    %37 = vector.shape_cast %36 : vector<128xf32> to vector<1x128xf32>
    %38 = arith.addf %35, %37 : vector<1x128xf32>
    %c0_27 = arith.constant 0 : index
    %c0_28 = arith.constant 0 : index
    %39 = vector.load %arg9[%c0_27, %c0_28] : memref<1x128xf32, #tpu.memory_space<vmem>>, vector<1x128xf32>
    tpu.vector_store %arg9[%c0_27, %c0_28], %38 {strides = array<i32>} : memref<1x128xf32, #tpu.memory_space<vmem>>, vector<1x128xf32>,
    %c0_i32_29 = arith.constant 0 : i32
    %40 = arith.cmpi eq, %arg1, %c0_i32_29 : i32
    %41 = arith.extui %40 : i1 to i32
    %c0_i32_30 = arith.constant 0 : i32
    %42 = arith.cmpi ne, %41, %c0_i32_30 : i32
    scf.if %42 {
      %c0_31 = arith.constant 0 : index
      %c0_32 = arith.constant 0 : index
      %43 = vector.load %arg9[%c0_31, %c0_32] : memref<1x128xf32, #tpu.memory_space<vmem>>, vector<1x128xf32>
      %cst_33 = arith.constant 1.250000e-01 : f32
      %44 = vector.broadcast %cst_33 : f32 to vector<1x128xf32>
      %45 = arith.mulf %43, %44 : vector<1x128xf32>
      %c0_34 = arith.constant 0 : index
      %c0_35 = arith.constant 0 : index
      %c0_36 = arith.constant 0 : index
      %46 = vector.load %arg8[%c0_34, %c0_35, %c0_36] : memref<1x1x128xf32, #tpu.memory_space<vmem>>, vector<1x1x128xf32>
      %47 = vector.shape_cast %46 : vector<1x1x128xf32> to vector<1x128xf32>
      %48 = vector.shape_cast %45 : vector<1x128xf32> to vector<1x1x128xf32>
      tpu.vector_store %arg8[%c0_34, %c0_35, %c0_36], %48 {strides = array<i32>} : memref<1x1x128xf32, #tpu.memory_space<vmem>>, vector<1x1x128xf32>,
      %c0_37 = arith.constant 0 : index
      %c0_38 = arith.constant 0 : index
      %49 = vector.load %arg5[%c0_37, %c0_38] : memref<128x128xf32, #tpu.memory_space<vmem>>, vector<128x128xf32>
      %cst_39 = arith.constant dense<0.000000e+00> : vector<1x128xf32>
      %50 = tpu.matmul %45, %49, %cst_39 {dimension_numbers = #tpu.dot_dimension_numbers<[1], [0], [0], [1], [0, 0, 1, 1], [], []>} : vector<1x128xf32>, vector<128x128xf32>, vector<1x128xf32> -> vector<1x128xf32>
      %c0_40 = arith.constant 0 : index
      %c0_41 = arith.constant 0 : index
      %51 = vector.load %arg6[%c0_40, %c0_41] : memref<1x128xf32, #tpu.memory_space<vmem>>, vector<1x128xf32>
      %52 = arith.addf %50, %51 : vector<1x128xf32>
      %c0_42 = arith.constant 0 : index
      %c0_43 = arith.constant 0 : index
      %c0_44 = arith.constant 0 : index
      %53 = vector.load %arg7[%c0_42, %c0_43, %c0_44] : memref<1x1x128xf32, #tpu.memory_space<vmem>>, vector<1x1x128xf32>
      %54 = vector.shape_cast %53 : vector<1x1x128xf32> to vector<1x128xf32>
      %55 = vector.shape_cast %52 : vector<1x128xf32> to vector<1x1x128xf32>
      tpu.vector_store %arg7[%c0_42, %c0_43, %c0_44], %55 {strides = array<i32>} : memref<1x1x128xf32, #tpu.memory_space<vmem>>, vector<1x1x128xf32>,
    } else {
    }
    return
  }
  func.func @transform_0(%arg0: i32, %arg1: i32) -> (i32, i32, i32) {
    %c0_i32 = arith.constant 0 : i32
    %c0_i32_0 = arith.constant 0 : i32
    return %arg0, %arg1, %c0_i32 : i32, i32, i32
  }
  func.func @transform_1(%arg0: i32, %arg1: i32) -> (i32, i32, i32) {
    %c0_i32 = arith.constant 0 : i32
    %c0_i32_0 = arith.constant 0 : i32
    %c0_i32_1 = arith.constant 0 : i32
    %c0_i32_2 = arith.constant 0 : i32
    return %c0_i32, %c0_i32_0, %c0_i32_1 : i32, i32, i32
  }
  func.func @transform_2(%arg0: i32, %arg1: i32) -> (i32, i32, i32) {
    %c0_i32 = arith.constant 0 : i32
    %c0_i32_0 = arith.constant 0 : i32
    %c0_i32_1 = arith.constant 0 : i32
    %c0_i32_2 = arith.constant 0 : i32
    return %c0_i32, %c0_i32_0, %c0_i32_1 : i32, i32, i32
  }
  func.func @transform_3(%arg0: i32, %arg1: i32) -> (i32, i32) {
    %c0_i32 = arith.constant 0 : i32
    %c0_i32_0 = arith.constant 0 : i32
    %c0_i32_1 = arith.constant 0 : i32
    return %c0_i32, %c0_i32_0 : i32, i32
  }
  func.func @transform_4(%arg0: i32, %arg1: i32) -> (i32, i32) {
    %c0_i32 = arith.constant 0 : i32
    %c0_i32_0 = arith.constant 0 : i32
    %c0_i32_1 = arith.constant 0 : i32
    return %c0_i32, %c0_i32_0 : i32, i32
  }
  func.func @transform_5(%arg0: i32, %arg1: i32) -> (i32, i32, i32) {
    %c0_i32 = arith.constant 0 : i32
    %c0_i32_0 = arith.constant 0 : i32
    %c0_i32_1 = arith.constant 0 : i32
    return %arg0, %c0_i32, %c0_i32_0 : i32, i32, i32
  }
  func.func @transform_6(%arg0: i32, %arg1: i32) -> (i32, i32, i32) {
    %c0_i32 = arith.constant 0 : i32
    %c0_i32_0 = arith.constant 0 : i32
    %c0_i32_1 = arith.constant 0 : i32
    return %arg0, %c0_i32, %c0_i32_0 : i32, i32, i32
  }
}

</mosaic_0001>

<llo_original>
// kernel: mlp_forward.1
$region0: #{mlp_forward.1}
  #allocation0 [shape = 'u32[]', space=smem, size = 0x4, offset = 0x4, fixed_abs, tag = 'smem constant byte address 0x4 - core index']
  #allocation1 [shape = 'u32[144,128]{1,0:T(1,128)}', space=vmem, size = 0x12000, scoped, tag = 'internal scratch']
  #allocation2 [shape = 'f32[1,128]{1,0:T(1,128)}', space=vmem, size = 0x200, scoped, tag = 'scratch operand']
  %s0 = inlined_call_operand.vmem [shape: f32[2,8,128], index: 0, kind: input, shape index: {}]
  %s1 = inlined_call_operand.vmem [shape: f32[3,128,128], index: 1, kind: input, shape index: {}]
  %s2 = inlined_call_operand.vmem [shape: f32[3,1,128], index: 2, kind: input, shape index: {}]
  %s3 = inlined_call_operand.vmem [shape: f32[128,128], index: 3, kind: input, shape index: {}]
  %s4 = inlined_call_operand.vmem [shape: f32[1,128], index: 4, kind: input, shape index: {}]
  %s5 = inlined_call_operand.hbm [shape: f32[2,1,128], index: 5, kind: output, shape index: {0}]
  %s6 = inlined_call_operand.hbm [shape: f32[2,1,128], index: 6, kind: output, shape index: {1}]
  %7 = xla_tuple %s5, %s6
  %s8 = sld [smem:[#allocation0]]
  $region69: #{mlp_forward.1} parent=0
    _
  %s10 = ssub.s32 1, %s8
  %s11 = scalar_select 0, %s10, %s8
  $region1: #{mlp_forward.1} parent=0
    #allocation3 [shape = 'u8[1024]{0}', space=vmem, size = 0x400, scoped, tag = 'output window, operand 0']
    #allocation4 [shape = 's32[2]{0}', space=sflag, size = 0x8, scoped, tag = 'scoped memory for mlp_forward.1']
    #allocation5 [shape = 'u8[1024]{0}', space=vmem, size = 0x400, scoped, tag = 'output window, operand 1']
    #allocation6 [shape = 's32[2]{0}', space=sflag, size = 0x8, scoped, tag = 'scoped memory for mlp_forward.1']
    %12 = vsyncpa [#allocation4], 0
    %s13 = scalar_lea.sflag [#allocation4], 1
    %14 = vsyncpa %s13, 0
    %15 = vsyncpa [#allocation6], 0
    %s16 = scalar_lea.sflag [#allocation6], 1
    %17 = vsyncpa %s16, 0
    loop: start=0, step=1, limit=4
    $region2: #{mlp_forward.1} parent=1 // loop_pre_header
      _
    $region3: #{mlp_forward.1} parent=1 // loop_header
      %s19 = sphi 0, %s23
      %p20 = scmp.ge.s32.totalorder %s19, 4
      %s26 = sphi 0, %s38
      %s27 = sphi 0, %s34
      %s28 = sphi 0, %s26
      %s29 = sphi 0, %s27
      %s30 = sphi 0, %s28
      %s31 = sphi 0, %s29
      %s43 = sphi 0, %s45
      %s46 = sphi 0, %s43
      %s47 = sphi 0, %s46
      %s63 = sphi 0, %s47
      %s67 = sphi 0, %s67
      %s69 = sphi 0, %s67
      %s70 = sphi 0, %s69
      %s84 = sphi 0, %s70
      %s88 = sphi 0, %s88
      %s90 = sphi 0, %s88
      %s91 = sphi 0, %s90
      %s105 = sphi 0, %s91
      %s109 = sphi 0, %s109
      %s111 = sphi 0, %s109
      %s112 = sphi 0, %s111
      %s126 = sphi 0, %s112
      %s130 = sphi 0, %s130
      %s132 = sphi 0, %s130
      %s133 = sphi 0, %s132
      %s147 = sphi 0, %s133
      %s153 = sphi 0, %s155
      %s156 = sphi 0, %s153
      %s157 = sphi 0, %s156
      %s173 = sphi 0, %s157
      %s179 = sphi 0, %s181
      %s182 = sphi 0, %s179
      %s183 = sphi 0, %s182
      %s199 = sphi 0, %s183
    $region4: #{mlp_forward.1} parent=1 // loop_header_branch
      %22 = sbr.rel (%p20) target = $region8
    $region5: #{mlp_forward.1} parent=1 // loop_body
      %s24 = ssub.s32 %s19, 1
      %s25 = ssub.s32 %s19, 2
      %s32 = sadd.s32 1, %s27
      %p33 = scmp.ge.s32.totalorder %s32, 1
      %s34 = scalar_select %p33, 0, %s32
      %s35 = sadd.s32 1, %s26
      %s36 = scalar_select %p33, %s35, %s26
      %p37 = scmp.ge.s32.totalorder %s36, 2
      %s38 = scalar_select %p37, 0, %s36
      %s39 = ssub.s32 %s26, %s38
      %s40 = ssub.s32 %s27, %s34
      %s41 = sor.u32 %s39, %s40
      %p42 = scmp.eq.s32.totalorder %s41, 0
      %s44 = sadd.s32 %s43, 1
      %s45 = scalar_select %p42, %s43, %s44
      %p48 = pneg %p42
      %p49 = scmp.eq.s32.totalorder %s19, 1
      %p50 = por %p48, %p49
      %p51 = scmp.ne.s32.totalorder %s43, %s46
      %p52 = scmp.eq.s32.totalorder %s19, 0
      %p53 = por %p51, %p52
      %p54 = scmp.ne.s32.totalorder %s43, %s46
      %p55 = scmp.eq.s32.totalorder %s24, 1
      %p56 = por %p54, %p55
      %p57 = scmp.ne.s32.totalorder %s46, %s47
      %p58 = scmp.eq.s32.totalorder %s24, 0
      %p59 = por %p57, %p58
      %p60 = scmp.ne.s32.totalorder %s46, %s47
      %p61 = scmp.eq.s32.totalorder %s25, 1
      %p62 = por %p60, %p61
      %p64 = scmp.ne.s32.totalorder %s47, %s63
      %p65 = scmp.eq.s32.totalorder %s25, 0
      %p66 = por %p64, %p65
      %s68 = sadd.s32 %s67, 1
      %p71 = scmp.eq.s32.totalorder %s19, 1
      %p72 = scmp.ne.s32.totalorder %s67, %s69
      %p73 = scmp.eq.s32.totalorder %s19, 0
      %p74 = por %p72, %p73
      %p75 = scmp.ne.s32.totalorder %s67, %s69
      %p76 = scmp.eq.s32.totalorder %s24, 1
      %p77 = por %p75, %p76
      %p78 = scmp.ne.s32.totalorder %s69, %s70
      %p79 = scmp.eq.s32.totalorder %s24, 0
      %p80 = por %p78, %p79
      %p81 = scmp.ne.s32.totalorder %s69, %s70
      %p82 = scmp.eq.s32.totalorder %s25, 1
      %p83 = por %p81, %p82
      %p85 = scmp.ne.s32.totalorder %s70, %s84
      %p86 = scmp.eq.s32.totalorder %s25, 0
      %p87 = por %p85, %p86
      %s89 = sadd.s32 %s88, 1
      %p92 = scmp.eq.s32.totalorder %s19, 1
      %p93 = scmp.ne.s32.totalorder %s88, %s90
      %p94 = scmp.eq.s32.totalorder %s19, 0
      %p95 = por %p93, %p94
      %p96 = scmp.ne.s32.totalorder %s88, %s90
      %p97 = scmp.eq.s32.totalorder %s24, 1
      %p98 = por %p96, %p97
      %p99 = scmp.ne.s32.totalorder %s90, %s91
      %p100 = scmp.eq.s32.totalorder %s24, 0
      %p101 = por %p99, %p100
      %p102 = scmp.ne.s32.totalorder %s90, %s91
      %p103 = scmp.eq.s32.totalorder %s25, 1
      %p104 = por %p102, %p103
      %p106 = scmp.ne.s32.totalorder %s91, %s105
      %p107 = scmp.eq.s32.totalorder %s25, 0
      %p108 = por %p106, %p107
      %s110 = sadd.s32 %s109, 1
      %p113 = scmp.eq.s32.totalorder %s19, 1
      %p114 = scmp.ne.s32.totalorder %s109, %s111
      %p115 = scmp.eq.s32.totalorder %s19, 0
      %p116 = por %p114, %p115
      %p117 = scmp.ne.s32.totalorder %s109, %s111
      %p118 = scmp.eq.s32.totalorder %s24, 1
      %p119 = por %p117, %p118
      %p120 = scmp.ne.s32.totalorder %s111, %s112
      %p121 = scmp.eq.s32.totalorder %s24, 0
      %p122 = por %p120, %p121
      %p123 = scmp.ne.s32.totalorder %s111, %s112
      %p124 = scmp.eq.s32.totalorder %s25, 1
      %p125 = por %p123, %p124
      %p127 = scmp.ne.s32.totalorder %s112, %s126
      %p128 = scmp.eq.s32.totalorder %s25, 0
      %p129 = por %p127, %p128
      %s131 = sadd.s32 %s130, 1
      %p134 = scmp.eq.s32.totalorder %s19, 1
      %p135 = scmp.ne.s32.totalorder %s130, %s132
      %p136 = scmp.eq.s32.totalorder %s19, 0
      %p137 = por %p135, %p136
      %p138 = scmp.ne.s32.totalorder %s130, %s132
      %p139 = scmp.eq.s32.totalorder %s24, 1
      %p140 = por %p138, %p139
      %p141 = scmp.ne.s32.totalorder %s132, %s133
      %p142 = scmp.eq.s32.totalorder %s24, 0
      %p143 = por %p141, %p142
      %p144 = scmp.ne.s32.totalorder %s132, %s133
      %p145 = scmp.eq.s32.totalorder %s25, 1
      %p146 = por %p144, %p145
      %p148 = scmp.ne.s32.totalorder %s133, %s147
      %p149 = scmp.eq.s32.totalorder %s25, 0
      %p150 = por %p148, %p149
      %s151 = ssub.s32 %s26, %s38
      %p152 = scmp.eq.s32.totalorder %s151, 0
      %s154 = sadd.s32 %s153, 1
      %s155 = scalar_select %p152, %s153, %s154
      %p158 = pneg %p152
      %p159 = scmp.eq.s32.totalorder %s19, 1
      %p160 = por %p158, %p159
      %p161 = scmp.ne.s32.totalorder %s153, %s156
      %p162 = scmp.eq.s32.totalorder %s19, 0
      %p163 = por %p161, %p162
      %p164 = scmp.ne.s32.totalorder %s153, %s156
      %p165 = scmp.eq.s32.totalorder %s24, 1
      %p166 = por %p164, %p165
      %p167 = scmp.ne.s32.totalorder %s156, %s157
      %p168 = scmp.eq.s32.totalorder %s24, 0
      %p169 = por %p167, %p168
      %p170 = scmp.ne.s32.totalorder %s156, %s157
      %p171 = scmp.eq.s32.totalorder %s25, 1
      %p172 = por %p170, %p171
      %p174 = scmp.ne.s32.totalorder %s157, %s173
      %p175 = scmp.eq.s32.totalorder %s25, 0
      %p176 = por %p174, %p175
      %s177 = ssub.s32 %s26, %s38
      %p178 = scmp.eq.s32.totalorder %s177, 0
      %s180 = sadd.s32 %s179, 1
      %s181 = scalar_select %p178, %s179, %s180
      %p184 = pneg %p178
      %p185 = scmp.eq.s32.totalorder %s19, 1
      %p186 = por %p184, %p185
      %p187 = scmp.ne.s32.totalorder %s179, %s182
      %p188 = scmp.eq.s32.totalorder %s19, 0
      %p189 = por %p187, %p188
      %p190 = scmp.ne.s32.totalorder %s179, %s182
      %p191 = scmp.eq.s32.totalorder %s24, 1
      %p192 = por %p190, %p191
      %p193 = scmp.ne.s32.totalorder %s182, %s183
      %p194 = scmp.eq.s32.totalorder %s24, 0
      %p195 = por %p193, %p194
      %p196 = scmp.ne.s32.totalorder %s182, %s183
      %p197 = scmp.eq.s32.totalorder %s25, 1
      %p198 = por %p196, %p197
      %p200 = scmp.ne.s32.totalorder %s183, %s199
      %p201 = scmp.eq.s32.totalorder %s25, 0
      %p202 = por %p200, %p201
      %p203 = scmp.le.s32.totalorder 1, %s19
      %p204 = scmp.lt.s32.totalorder %s19, 3
      %p205 = pnand %p203, %p204
      %p206 = pneg %p205
      // Predicated region
      $region9: #{mlp_forward.1} parent=5 // pred_check
        _
      $region10: #{mlp_forward.1} parent=5 // pred_check_branch
        %208 = sbr.rel (%p205) target = $region12
      $region11: #{mlp_forward.1} parent=5 // pred_region
        %s209 = ssub.s32 %s19, 1
        // Predicated region
        $region13: #{mlp_forward.1} parent=11 // pred_check
          %p210 = pneg %p80
        $region14: #{mlp_forward.1} parent=11 // pred_check_branch
          %212 = sbr.rel (%p210) target = $region16
        $region15: #{mlp_forward.1} parent=11 // pred_region
          _
        $region16: #{mlp_forward.1} parent=11 // pred_fallthru
          _
        // Predicated region
        $region17: #{mlp_forward.1} parent=11 // pred_check
          %p213 = pneg %p101
        $region18: #{mlp_forward.1} parent=11 // pred_check_branch
          %215 = sbr.rel (%p213) target = $region20
        $region19: #{mlp_forward.1} parent=11 // pred_region
          _
        $region20: #{mlp_forward.1} parent=11 // pred_fallthru
          _
        // Predicated region
        $region21: #{mlp_forward.1} parent=11 // pred_check
          %p216 = pneg %p122
        $region22: #{mlp_forward.1} parent=11 // pred_check_branch
          %218 = sbr.rel (%p216) target = $region24
        $region23: #{mlp_forward.1} parent=11 // pred_region
          _
        $region24: #{mlp_forward.1} parent=11 // pred_fallthru
          _
        // Predicated region
        $region25: #{mlp_forward.1} parent=11 // pred_check
          %p219 = pneg %p143
        $region26: #{mlp_forward.1} parent=11 // pred_check_branch
          %221 = sbr.rel (%p219) target = $region28
        $region27: #{mlp_forward.1} parent=11 // pred_region
          _
        $region28: #{mlp_forward.1} parent=11 // pred_fallthru
          _
      $region12: #{mlp_forward.1} parent=5 // pred_fallthru
        _
      %p222 = scmp.lt.s32.totalorder %s19, 2
      // Predicated region
      $region29: #{mlp_forward.1} parent=5 // pred_check
        %p223 = pneg %p222
      $region30: #{mlp_forward.1} parent=5 // pred_check_branch
        %225 = sbr.rel (%p223) target = $region32
      $region31: #{mlp_forward.1} parent=5 // pred_region
        // Predicated region
        $region33: #{mlp_forward.1} parent=31 // pred_check
          %p226 = pneg %p53
        $region34: #{mlp_forward.1} parent=31 // pred_check_branch
          %228 = sbr.rel (%p226) target = $region36
        $region35: #{mlp_forward.1} parent=31 // pred_region
          %p229 = scmp.lt.s32.totalorder %s26, 1
          %s230 = scalar_select %p229, %s26, 1
          %p231 = scmp.lt.s32.totalorder %s27, 0
          %s232 = scalar_select %p231, %s27, 0
          %s233 = sadd.s32 %s232, %s230
          %s234 = smul.addr %s233, 8
          %s235 = scalar_lea.vmem %s0, %s234
        $region36: #{mlp_forward.1} parent=31 // pred_fallthru
          _
      $region32: #{mlp_forward.1} parent=5 // pred_fallthru
        _
      %p236 = scmp.le.s32.totalorder 1, %s19
      %p237 = scmp.lt.s32.totalorder %s19, 3
      %p238 = pnand %p236, %p237
      %p239 = pneg %p238
      // Predicated region
      $region37: #{mlp_forward.1} parent=5 // pred_check
        _
      $region38: #{mlp_forward.1} parent=5 // pred_check_branch
        %241 = sbr.rel (%p238) target = $region40
      $region39: #{mlp_forward.1} parent=5 // pred_region
        %s242 = ssub.s32 %s19, 1
        %p243 = scmp.lt.s32.totalorder %s28, 1
        %s244 = scalar_select %p243, %s28, 1
        %p245 = scmp.lt.s32.totalorder %s29, 0
        %s246 = scalar_select %p245, %s29, 0
        %s247 = sadd.s32 %s246, %s244
        %s248 = smul.addr %s247, 8
        %s249 = scalar_lea.vmem %s0, %s248
        %p250 = pneg %p59
        %p251 = pneg %p56
        %p252 = pneg %p80
        %p253 = pneg %p77
        %p254 = pneg %p101
        %p255 = pneg %p98
        %p256 = pneg %p122
        %p257 = pneg %p119
        %p258 = pneg %p143
        %p259 = pneg %p140
        %p260 = pneg %p169
        %p261 = pneg %p166
        %s262 = sand.u32 %s156, 1
        %s263 = scalar_lea.sflag [#allocation4], %s262
        %s264 = sand.u32 %s156, 1
        %s265 = scalar_lea.vmem [#allocation3], %s264
        %p266 = pneg %p195
        %p267 = pneg %p192
        %s268 = sand.u32 %s182, 1
        %s269 = scalar_lea.sflag [#allocation6], %s268
        %s270 = sand.u32 %s182, 1
        %s271 = scalar_lea.vmem [#allocation5], %s270
        %p272 = scmp.lt.s32.totalorder %s28, 1
        %s273 = scalar_select %p272, %s28, 1
        %p274 = scmp.lt.s32.totalorder %s29, 0
        %s275 = scalar_select %p274, %s29, 0
        %s276 = sadd.s32 %s275, %s273
        %s277 = smul.addr %s276, 8
        %s278 = scalar_lea.vmem %s0, %s277
        %p279 = scmp.eq.s32.totalorder %s29, 0
        // Predicated region
        $region41: #{mlp_forward.1} parent=39 // pred_check
          %p280 = pneg %p279
        $region42: #{mlp_forward.1} parent=39 // pred_check_branch
          %282 = sbr.rel (%p280) target = $region44
        $region43: #{mlp_forward.1} parent=39 // pred_region
          %283 = vst [vmem:[#allocation2] sm:$0x1] 0.0
        $region44: #{mlp_forward.1} parent=39 // pred_fallthru
          _
        %v284 = vld [vmem:[%s278] sm:$0xff]
        %v285 = vld [vmem:[%s1] sm:$0xff]
        %v286 = vld [vmem:[%s1 + $0x8] sm:$0xff]
        %v287 = vld [vmem:[%s1 + $0x10] sm:$0xff]
        %v288 = vld [vmem:[%s1 + $0x18] sm:$0xff]
        %v289 = vld [vmem:[%s1 + $0x20] sm:$0xff]
        %v290 = vld [vmem:[%s1 + $0x28] sm:$0xff]
        %v291 = vld [vmem:[%s1 + $0x30] sm:$0xff]
        %v292 = vld [vmem:[%s1 + $0x38] sm:$0xff]
        %v293 = vld [vmem:[%s1 + $0x40] sm:$0xff]
        %v294 = vld [vmem:[%s1 + $0x48] sm:$0xff]
        %v295 = vld [vmem:[%s1 + $0x50] sm:$0xff]
        %v296 = vld [vmem:[%s1 + $0x58] sm:$0xff]
        %v297 = vld [vmem:[%s1 + $0x60] sm:$0xff]
        %v298 = vld [vmem:[%s1 + $0x68] sm:$0xff]
        %v299 = vld [vmem:[%s1 + $0x70] sm:$0xff]
        %v300 = vld [vmem:[%s1 + $0x78] sm:$0xff]
        %v301 = vld [vmem:[%s2] sm:$0x1]
        %v303 = vlaneseq
        %v304 = vshrl.u32 %v303, 7
        %v305 = vsub.s32 0, %v304
        %v306 = vrot.slane %v301, %v305
        %308 = vmatprep.subr.mxu0 0.0
        %309 = vmatpush1.msra.mxu0 %v300
        %310 = vmatprep.subr.mxu0 0.0
        %311 = vmatpush1.msra.mxu0 %v299
        %312 = vmatprep.subr.mxu0 0.0
        %313 = vmatpush1.msra.mxu0 %v298
        %314 = vmatprep.subr.mxu0 0.0
        %315 = vmatpush1.msra.mxu0 %v297
        %316 = vmatprep.subr.mxu0 0.0
        %317 = vmatpush1.msra.mxu0 %v296
        %318 = vmatprep.subr.mxu0 0.0
        %319 = vmatpush1.msra.mxu0 %v295
        %320 = vmatprep.subr.mxu0 0.0
        %321 = vmatpush1.msra.mxu0 %v294
        %322 = vmatprep.subr.mxu0 0.0
        %323 = vmatpush1.msra.mxu0 %v293
        %324 = vmatprep.subr.mxu0 0.0
        %325 = vmatpush1.msra.mxu0 %v292
        %326 = vmatprep.subr.mxu0 0.0
        %327 = vmatpush1.msra.mxu0 %v291
        %328 = vmatprep.subr.mxu0 0.0
        %329 = vmatpush1.msra.mxu0 %v290
        %330 = vmatprep.subr.mxu0 0.0
        %331 = vmatpush1.msra.mxu0 %v289
        %332 = vmatprep.subr.mxu0 0.0
        %333 = vmatpush1.msra.mxu0 %v288
        %334 = vmatprep.subr.mxu0 0.0
        %335 = vmatpush1.msra.mxu0 %v287
        %336 = vmatprep.subr.mxu0 0.0
        %337 = vmatpush1.msra.mxu0 %v286
        %338 = vmatprep.subr.mxu0 0.0
        %339 = vmatpush1.msra.mxu0 %v285
        %340 = vmatprep.subr.mxu0 0.0
        %341 = vmatpush2.msra.mxu0 0.0
        %342 = vmatprep.subr.mxu0 0.0
        %343 = vmatpush2.msra.mxu0 0.0
        %344 = vmatprep.subr.mxu0 0.0
        %345 = vmatpush2.msra.mxu0 0.0
        %346 = vmatprep.subr.mxu0 0.0
        %347 = vmatpush2.msra.mxu0 0.0
        %348 = vmatprep.subr.mxu0 0.0
        %349 = vmatpush2.msra.mxu0 0.0
        %350 = vmatprep.subr.mxu0 0.0
        %351 = vmatpush2.msra.mxu0 0.0
        %352 = vmatprep.subr.mxu0 0.0
        %353 = vmatpush2.msra.mxu0 0.0
        %354 = vmatprep.subr.mxu0 0.0
        %355 = vmatpush2.msra.mxu0 0.0
        %356 = vmatprep.subr.mxu0 0.0
        %357 = vmatpush2.msra.mxu0 0.0
        %358 = vmatprep.subr.mxu0 0.0
        %359 = vmatpush2.msra.mxu0 0.0
        %360 = vmatprep.subr.mxu0 0.0
        %361 = vmatpush2.msra.mxu0 0.0
        %362 = vmatprep.subr.mxu0 0.0
        %363 = vmatpush2.msra.mxu0 0.0
        %364 = vmatprep.subr.mxu0 0.0
        %365 = vmatpush2.msra.mxu0 0.0
        %366 = vmatprep.subr.mxu0 0.0
        %367 = vmatpush2.msra.mxu0 0.0
        %368 = vmatprep.subr.mxu0 0.0
        %369 = vmatpush2.msra.mxu0 0.0
        %370 = vmatprep.subr.mxu0 0.0
        %371 = vmatpush2.msra.mxu0 0.0
        %372 = vmatprep.mubr.f32.mxu0 0.0
        %373 = vmatmul.mubr.f32.gmra.mxu0 %v284
        %v374 = vpop.f32.mrf.mxu0
        %v375 = vadd.f32 %v306, %v374
        %v376 = vpop.f32.mrf.mxu0
        %377 = vdwg.mxu0
        %v378 = vmul.f32 %v375, 0.01
        %v379 = vmax.f32 %v375, %v378
        %s380 = scalar_lea.vmem %s1, 128
        %v381 = vld [vmem:[%s380] sm:$0xff]
        %v382 = vld [vmem:[%s380 + $0x8] sm:$0xff]
        %v383 = vld [vmem:[%s380 + $0x10] sm:$0xff]
        %v384 = vld [vmem:[%s380 + $0x18] sm:$0xff]
        %v385 = vld [vmem:[%s380 + $0x20] sm:$0xff]
        %v386 = vld [vmem:[%s380 + $0x28] sm:$0xff]
        %v387 = vld [vmem:[%s380 + $0x30] sm:$0xff]
        %v388 = vld [vmem:[%s380 + $0x38] sm:$0xff]
        %v389 = vld [vmem:[%s380 + $0x40] sm:$0xff]
        %v390 = vld [vmem:[%s380 + $0x48] sm:$0xff]
        %v391 = vld [vmem:[%s380 + $0x50] sm:$0xff]
        %v392 = vld [vmem:[%s380 + $0x58] sm:$0xff]
        %v393 = vld [vmem:[%s380 + $0x60] sm:$0xff]
        %v394 = vld [vmem:[%s380 + $0x68] sm:$0xff]
        %v395 = vld [vmem:[%s380 + $0x70] sm:$0xff]
        %v396 = vld [vmem:[%s380 + $0x78] sm:$0xff]
        %s397 = scalar_lea.vmem %s2, 1
        %v398 = vld [vmem:[%s397] sm:$0x1]
        %v400 = vlaneseq
        %v401 = vshrl.u32 %v400, 7
        %v402 = vsub.s32 0, %v401
        %v403 = vrot.slane %v398, %v402
        %405 = vmatprep.subr.mxu0 0.0
        %406 = vmatpush1.msra.mxu0 %v396
        %407 = vmatprep.subr.mxu0 0.0
        %408 = vmatpush1.msra.mxu0 %v395
        %409 = vmatprep.subr.mxu0 0.0
        %410 = vmatpush1.msra.mxu0 %v394
        %411 = vmatprep.subr.mxu0 0.0
        %412 = vmatpush1.msra.mxu0 %v393
        %413 = vmatprep.subr.mxu0 0.0
        %414 = vmatpush1.msra.mxu0 %v392
        %415 = vmatprep.subr.mxu0 0.0
        %416 = vmatpush1.msra.mxu0 %v391
        %417 = vmatprep.subr.mxu0 0.0
        %418 = vmatpush1.msra.mxu0 %v390
        %419 = vmatprep.subr.mxu0 0.0
        %420 = vmatpush1.msra.mxu0 %v389
        %421 = vmatprep.subr.mxu0 0.0
        %422 = vmatpush1.msra.mxu0 %v388
        %423 = vmatprep.subr.mxu0 0.0
        %424 = vmatpush1.msra.mxu0 %v387
        %425 = vmatprep.subr.mxu0 0.0
        %426 = vmatpush1.msra.mxu0 %v386
        %427 = vmatprep.subr.mxu0 0.0
        %428 = vmatpush1.msra.mxu0 %v385
        %429 = vmatprep.subr.mxu0 0.0
        %430 = vmatpush1.msra.mxu0 %v384
        %431 = vmatprep.subr.mxu0 0.0
        %432 = vmatpush1.msra.mxu0 %v383
        %433 = vmatprep.subr.mxu0 0.0
        %434 = vmatpush1.msra.mxu0 %v382
        %435 = vmatprep.subr.mxu0 0.0
        %436 = vmatpush1.msra.mxu0 %v381
        %437 = vmatprep.subr.mxu0 0.0
        %438 = vmatpush2.msra.mxu0 0.0
        %439 = vmatprep.subr.mxu0 0.0
        %440 = vmatpush2.msra.mxu0 0.0
        %441 = vmatprep.subr.mxu0 0.0
        %442 = vmatpush2.msra.mxu0 0.0
        %443 = vmatprep.subr.mxu0 0.0
        %444 = vmatpush2.msra.mxu0 0.0
        %445 = vmatprep.subr.mxu0 0.0
        %446 = vmatpush2.msra.mxu0 0.0
        %447 = vmatprep.subr.mxu0 0.0
        %448 = vmatpush2.msra.mxu0 0.0
        %449 = vmatprep.subr.mxu0 0.0
        %450 = vmatpush2.msra.mxu0 0.0
        %451 = vmatprep.subr.mxu0 0.0
        %452 = vmatpush2.msra.mxu0 0.0
        %453 = vmatprep.subr.mxu0 0.0
        %454 = vmatpush2.msra.mxu0 0.0
        %455 = vmatprep.subr.mxu0 0.0
        %456 = vmatpush2.msra.mxu0 0.0
        %457 = vmatprep.subr.mxu0 0.0
        %458 = vmatpush2.msra.mxu0 0.0
        %459 = vmatprep.subr.mxu0 0.0
        %460 = vmatpush2.msra.mxu0 0.0
        %461 = vmatprep.subr.mxu0 0.0
        %462 = vmatpush2.msra.mxu0 0.0
        %463 = vmatprep.subr.mxu0 0.0
        %464 = vmatpush2.msra.mxu0 0.0
        %465 = vmatprep.subr.mxu0 0.0
        %466 = vmatpush2.msra.mxu0 0.0
        %467 = vmatprep.subr.mxu0 0.0
        %468 = vmatpush2.msra.mxu0 0.0
        %469 = vmatprep.mubr.f32.mxu0 0.0
        %470 = vmatmul.mubr.f32.gmra.mxu0 %v379
        %v471 = vpop.f32.mrf.mxu0
        %v472 = vadd.f32 %v403, %v471
        %v473 = vpop.f32.mrf.mxu0
        %474 = vdwg.mxu0
        %v475 = vmul.f32 %v472, 0.01
        %v476 = vmax.f32 %v472, %v475
        %s477 = scalar_lea.vmem %s1, 256
        %v478 = vld [vmem:[%s477] sm:$0xff]
        %v479 = vld [vmem:[%s477 + $0x8] sm:$0xff]
        %v480 = vld [vmem:[%s477 + $0x10] sm:$0xff]
        %v481 = vld [vmem:[%s477 + $0x18] sm:$0xff]
        %v482 = vld [vmem:[%s477 + $0x20] sm:$0xff]
        %v483 = vld [vmem:[%s477 + $0x28] sm:$0xff]
        %v484 = vld [vmem:[%s477 + $0x30] sm:$0xff]
        %v485 = vld [vmem:[%s477 + $0x38] sm:$0xff]
        %v486 = vld [vmem:[%s477 + $0x40] sm:$0xff]
        %v487 = vld [vmem:[%s477 + $0x48] sm:$0xff]
        %v488 = vld [vmem:[%s477 + $0x50] sm:$0xff]
        %v489 = vld [vmem:[%s477 + $0x58] sm:$0xff]
        %v490 = vld [vmem:[%s477 + $0x60] sm:$0xff]
        %v491 = vld [vmem:[%s477 + $0x68] sm:$0xff]
        %v492 = vld [vmem:[%s477 + $0x70] sm:$0xff]
        %v493 = vld [vmem:[%s477 + $0x78] sm:$0xff]
        %s494 = scalar_lea.vmem %s2, 2
        %v495 = vld [vmem:[%s494] sm:$0x1]
        %v497 = vlaneseq
        %v498 = vshrl.u32 %v497, 7
        %v499 = vsub.s32 0, %v498
        %v500 = vrot.slane %v495, %v499
        %502 = vmatprep.subr.mxu0 0.0
        %503 = vmatpush1.msra.mxu0 %v493
        %504 = vmatprep.subr.mxu0 0.0
        %505 = vmatpush1.msra.mxu0 %v492
        %506 = vmatprep.subr.mxu0 0.0
        %507 = vmatpush1.msra.mxu0 %v491
        %508 = vmatprep.subr.mxu0 0.0
        %509 = vmatpush1.msra.mxu0 %v490
        %510 = vmatprep.subr.mxu0 0.0
        %511 = vmatpush1.msra.mxu0 %v489
        %512 = vmatprep.subr.mxu0 0.0
        %513 = vmatpush1.msra.mxu0 %v488
        %514 = vmatprep.subr.mxu0 0.0
        %515 = vmatpush1.msra.mxu0 %v487
        %516 = vmatprep.subr.mxu0 0.0
        %517 = vmatpush1.msra.mxu0 %v486
        %518 = vmatprep.subr.mxu0 0.0
        %519 = vmatpush1.msra.mxu0 %v485
        %520 = vmatprep.subr.mxu0 0.0
        %521 = vmatpush1.msra.mxu0 %v484
        %522 = vmatprep.subr.mxu0 0.0
        %523 = vmatpush1.msra.mxu0 %v483
        %524 = vmatprep.subr.mxu0 0.0
        %525 = vmatpush1.msra.mxu0 %v482
        %526 = vmatprep.subr.mxu0 0.0
        %527 = vmatpush1.msra.mxu0 %v481
        %528 = vmatprep.subr.mxu0 0.0
        %529 = vmatpush1.msra.mxu0 %v480
        %530 = vmatprep.subr.mxu0 0.0
        %531 = vmatpush1.msra.mxu0 %v479
        %532 = vmatprep.subr.mxu0 0.0
        %533 = vmatpush1.msra.mxu0 %v478
        %534 = vmatprep.subr.mxu0 0.0
        %535 = vmatpush2.msra.mxu0 0.0
        %536 = vmatprep.subr.mxu0 0.0
        %537 = vmatpush2.msra.mxu0 0.0
        %538 = vmatprep.subr.mxu0 0.0
        %539 = vmatpush2.msra.mxu0 0.0
        %540 = vmatprep.subr.mxu0 0.0
        %541 = vmatpush2.msra.mxu0 0.0
        %542 = vmatprep.subr.mxu0 0.0
        %543 = vmatpush2.msra.mxu0 0.0
        %544 = vmatprep.subr.mxu0 0.0
        %545 = vmatpush2.msra.mxu0 0.0
        %546 = vmatprep.subr.mxu0 0.0
        %547 = vmatpush2.msra.mxu0 0.0
        %548 = vmatprep.subr.mxu0 0.0
        %549 = vmatpush2.msra.mxu0 0.0
        %550 = vmatprep.subr.mxu0 0.0
        %551 = vmatpush2.msra.mxu0 0.0
        %552 = vmatprep.subr.mxu0 0.0
        %553 = vmatpush2.msra.mxu0 0.0
        %554 = vmatprep.subr.mxu0 0.0
        %555 = vmatpush2.msra.mxu0 0.0
        %556 = vmatprep.subr.mxu0 0.0
        %557 = vmatpush2.msra.mxu0 0.0
        %558 = vmatprep.subr.mxu0 0.0
        %559 = vmatpush2.msra.mxu0 0.0
        %560 = vmatprep.subr.mxu0 0.0
        %561 = vmatpush2.msra.mxu0 0.0
        %562 = vmatprep.subr.mxu0 0.0
        %563 = vmatpush2.msra.mxu0 0.0
        %564 = vmatprep.subr.mxu0 0.0
        %565 = vmatpush2.msra.mxu0 0.0
        %566 = vmatprep.mubr.f32.mxu0 0.0
        %567 = vmatmul.mubr.f32.gmra.mxu0 %v476
        %v568 = vpop.f32.mrf.mxu0
        %v569 = vadd.f32 %v500, %v568
        %v570 = vpop.f32.mrf.mxu0
        %571 = vdwg.mxu0
        %v572 = vmul.f32 %v569, 0.01
        %v573 = vmax.f32 %v569, %v572
        %v574 = vld [vmem:[#allocation2] sm:$0x1]
        %v575 = vrot.slane %v573, 4
        %v576 = vadd.f32 %v573, %v575
        %v577 = vrot.slane %v576, 2
        %v578 = vadd.f32 %v576, %v577
        %v579 = vrot.slane %v578, 1
        %v580 = vadd.f32 %v578, %v579
        %v581 = vadd.f32 %v574, %v580
        %582 = vst [vmem:[#allocation2] sm:$0x1] %v581
        // Predicated region
        $region45: #{mlp_forward.1} parent=39 // pred_check
          %p583 = pneg %p279
        $region46: #{mlp_forward.1} parent=39 // pred_check_branch
          %585 = sbr.rel (%p583) target = $region48
        $region47: #{mlp_forward.1} parent=39 // pred_region
          %v586 = vld [vmem:[#allocation2] sm:$0x1]
          %v587 = vmul.f32 %v586, 0.125
          %588 = vst [vmem:[%s271] sm:$0x1] %v587
          %v589 = vld [vmem:[%s3] sm:$0xff]
          %v590 = vld [vmem:[%s3 + $0x8] sm:$0xff]
          %v591 = vld [vmem:[%s3 + $0x10] sm:$0xff]
          %v592 = vld [vmem:[%s3 + $0x18] sm:$0xff]
          %v593 = vld [vmem:[%s3 + $0x20] sm:$0xff]
          %v594 = vld [vmem:[%s3 + $0x28] sm:$0xff]
          %v595 = vld [vmem:[%s3 + $0x30] sm:$0xff]
          %v596 = vld [vmem:[%s3 + $0x38] sm:$0xff]
          %v597 = vld [vmem:[%s3 + $0x40] sm:$0xff]
          %v598 = vld [vmem:[%s3 + $0x48] sm:$0xff]
          %v599 = vld [vmem:[%s3 + $0x50] sm:$0xff]
          %v600 = vld [vmem:[%s3 + $0x58] sm:$0xff]
          %v601 = vld [vmem:[%s3 + $0x60] sm:$0xff]
          %v602 = vld [vmem:[%s3 + $0x68] sm:$0xff]
          %v603 = vld [vmem:[%s3 + $0x70] sm:$0xff]
          %v604 = vld [vmem:[%s3 + $0x78] sm:$0xff]
          %v605 = vld [vmem:[%s4] sm:$0x1]
          %606 = vmatprep.subr.mxu0 0.0
          %607 = vmatpush1.msra.mxu0 %v604
          %608 = vmatprep.subr.mxu0 0.0
          %609 = vmatpush1.msra.mxu0 %v603
          %610 = vmatprep.subr.mxu0 0.0
          %611 = vmatpush1.msra.mxu0 %v602
          %612 = vmatprep.subr.mxu0 0.0
          %613 = vmatpush1.msra.mxu0 %v601
          %614 = vmatprep.subr.mxu0 0.0
          %615 = vmatpush1.msra.mxu0 %v600
          %616 = vmatprep.subr.mxu0 0.0
          %617 = vmatpush1.msra.mxu0 %v599
          %618 = vmatprep.subr.mxu0 0.0
          %619 = vmatpush1.msra.mxu0 %v598
          %620 = vmatprep.subr.mxu0 0.0
          %621 = vmatpush1.msra.mxu0 %v597
          %622 = vmatprep.subr.mxu0 0.0
          %623 = vmatpush1.msra.mxu0 %v596
          %624 = vmatprep.subr.mxu0 0.0
          %625 = vmatpush1.msra.mxu0 %v595
          %626 = vmatprep.subr.mxu0 0.0
          %627 = vmatpush1.msra.mxu0 %v594
          %628 = vmatprep.subr.mxu0 0.0
          %629 = vmatpush1.msra.mxu0 %v593
          %630 = vmatprep.subr.mxu0 0.0
          %631 = vmatpush1.msra.mxu0 %v592
          %632 = vmatprep.subr.mxu0 0.0
          %633 = vmatpush1.msra.mxu0 %v591
          %634 = vmatprep.subr.mxu0 0.0
          %635 = vmatpush1.msra.mxu0 %v590
          %636 = vmatprep.subr.mxu0 0.0
          %637 = vmatpush1.msra.mxu0 %v589
          %638 = vmatprep.subr.mxu0 0.0
          %639 = vmatpush2.msra.mxu0 0.0
          %640 = vmatprep.subr.mxu0 0.0
          %641 = vmatpush2.msra.mxu0 0.0
          %642 = vmatprep.subr.mxu0 0.0
          %643 = vmatpush2.msra.mxu0 0.0
          %644 = vmatprep.subr.mxu0 0.0
          %645 = vmatpush2.msra.mxu0 0.0
          %646 = vmatprep.subr.mxu0 0.0
          %647 = vmatpush2.msra.mxu0 0.0
          %648 = vmatprep.subr.mxu0 0.0
          %649 = vmatpush2.msra.mxu0 0.0
          %650 = vmatprep.subr.mxu0 0.0
          %651 = vmatpush2.msra.mxu0 0.0
          %652 = vmatprep.subr.mxu0 0.0
          %653 = vmatpush2.msra.mxu0 0.0
          %654 = vmatprep.subr.mxu0 0.0
          %655 = vmatpush2.msra.mxu0 0.0
          %656 = vmatprep.subr.mxu0 0.0
          %657 = vmatpush2.msra.mxu0 0.0
          %658 = vmatprep.subr.mxu0 0.0
          %659 = vmatpush2.msra.mxu0 0.0
          %660 = vmatprep.subr.mxu0 0.0
          %661 = vmatpush2.msra.mxu0 0.0
          %662 = vmatprep.subr.mxu0 0.0
          %663 = vmatpush2.msra.mxu0 0.0
          %664 = vmatprep.subr.mxu0 0.0
          %665 = vmatpush2.msra.mxu0 0.0
          %666 = vmatprep.subr.mxu0 0.0
          %667 = vmatpush2.msra.mxu0 0.0
          %668 = vmatprep.subr.mxu0 0.0
          %669 = vmatpush2.msra.mxu0 0.0
          %670 = vmatprep.mubr.f32.mxu0 0.0
          %671 = vmatmul.mubr.f32.gmra.mxu0 %v587
          %v672 = vpop.f32.mrf.mxu0
          %v673 = vadd.f32 %v605, %v672
          %v674 = vpop.f32.mrf.mxu0
          %675 = vdwg.mxu0
          %676 = vst [vmem:[%s265] sm:$0x1] %v673
        $region48: #{mlp_forward.1} parent=39 // pred_fallthru
          _
        %s677 = sand.u32 %s156, 1
        %s678 = scalar_lea.sflag [#allocation4], %s677
        %s679 = sand.u32 %s156, 1
        %s680 = scalar_lea.vmem [#allocation3], %s679
        %s681 = sand.u32 %s182, 1
        %s682 = scalar_lea.sflag [#allocation6], %s681
        %s683 = sand.u32 %s182, 1
        %s684 = scalar_lea.vmem [#allocation5], %s683
        // Predicated region
        $region49: #{mlp_forward.1} parent=39 // pred_check
          %p685 = pneg %p166
        $region50: #{mlp_forward.1} parent=39 // pred_check_branch
          %687 = sbr.rel (%p685) target = $region52
        $region51: #{mlp_forward.1} parent=39 // pred_region
          %s689 = ssub.s32 16, 16
          %690 = vsyncadd %s678, %s689
          %s691 = smul.addr %s28, 16
          %s692 = scalar_lea.hbm %s5, %s691
          %s694 = sshll.u32 %s680, 4
          %s695 = int_to_ptr.vmem [resolvable:$true] %s694
          %697 = dma.vmem_to_hbm [thread:$0]  %s695, 16, %s692, %s678
        $region52: #{mlp_forward.1} parent=39 // pred_fallthru
          _
        // Predicated region
        $region53: #{mlp_forward.1} parent=39 // pred_check
          %p698 = pneg %p192
        $region54: #{mlp_forward.1} parent=39 // pred_check_branch
          %700 = sbr.rel (%p698) target = $region56
        $region55: #{mlp_forward.1} parent=39 // pred_region
          %s702 = ssub.s32 16, 16
          %703 = vsyncadd %s682, %s702
          %s704 = smul.addr %s28, 16
          %s705 = scalar_lea.hbm %s6, %s704
          %s707 = sshll.u32 %s684, 4
          %s708 = int_to_ptr.vmem [resolvable:$true] %s707
          %710 = dma.vmem_to_hbm [thread:$0]  %s708, 16, %s705, %s682
        $region56: #{mlp_forward.1} parent=39 // pred_fallthru
          _
      $region40: #{mlp_forward.1} parent=5 // pred_fallthru
        _
      %p711 = scmp.le.s32.totalorder 2, %s19
      // Predicated region
      $region57: #{mlp_forward.1} parent=5 // pred_check
        %p712 = pneg %p711
      $region58: #{mlp_forward.1} parent=5 // pred_check_branch
        %714 = sbr.rel (%p712) target = $region60
      $region59: #{mlp_forward.1} parent=5 // pred_region
        %s715 = ssub.s32 %s19, 2
        // Predicated region
        $region61: #{mlp_forward.1} parent=59 // pred_check
          %p716 = pneg %p172
        $region62: #{mlp_forward.1} parent=59 // pred_check_branch
          %718 = sbr.rel (%p716) target = $region64
        $region63: #{mlp_forward.1} parent=59 // pred_region
          %s719 = sand.u32 %s157, 1
          %s720 = scalar_lea.sflag [#allocation4], %s719
          %s721 = sand.u32 %s157, 1
          %s722 = scalar_lea.vmem [#allocation3], %s721
          %723 = dma.done %s720, 16
        $region64: #{mlp_forward.1} parent=59 // pred_fallthru
          _
        // Predicated region
        $region65: #{mlp_forward.1} parent=59 // pred_check
          %p724 = pneg %p198
        $region66: #{mlp_forward.1} parent=59 // pred_check_branch
          %726 = sbr.rel (%p724) target = $region68
        $region67: #{mlp_forward.1} parent=59 // pred_region
          %s727 = sand.u32 %s183, 1
          %s728 = scalar_lea.sflag [#allocation6], %s727
          %s729 = sand.u32 %s183, 1
          %s730 = scalar_lea.vmem [#allocation5], %s729
          %731 = dma.done %s728, 16
        $region68: #{mlp_forward.1} parent=59 // pred_fallthru
          _
      $region60: #{mlp_forward.1} parent=5 // pred_fallthru
        _
    $region6: #{mlp_forward.1} parent=1 // loop_footer
      %s23 = sadd.s32 1, %s19
    $region7: #{mlp_forward.1} parent=1 // loop_footer_branch
      %18 = sbr.rel target = $region3
    $region8: #{mlp_forward.1} parent=1 // loop_exit
      _
    %732 = vsyncpa [#allocation4], 1
    %s733 = scalar_lea.sflag [#allocation4], 1
    %734 = vsyncpa %s733, 1
    %735 = vsyncpa [#allocation6], 1
    %s736 = scalar_lea.sflag [#allocation6], 1
    %737 = vsyncpa %s736, 1

</llo_original>
